<compile_context>
chip_gen: v7x
topology: tpu7x:2x2x1
jax: 0.10.0
libtpu: 0.0.40
codegen_flags: <defaults>
</compile_context>

<pallas_src>
import functools
import math

import jax
import jax.numpy as jnp
from jax.experimental import pallas as pl
from jax.experimental.pallas import tpu as pltpu


def _round_up(v, m):
    return (v + m - 1) // m * m


# ----------------------------------------------------------------------------
# Pallas kernel: fused multi-layer LightGCN propagation + layer mean
# ----------------------------------------------------------------------------
def _lightgcn_kernel(a_ref, x_ref, out_ref, xbuf, acc, blk_acc,
                     *, num_layers, tm, tk, n_pad):
    """Grid = (layer l, row-block i, contraction-block k); k innermost.

    a_ref   : (tm, tk)       bf16 tile of A_hat (streamed from HBM)
    x_ref   : (n_pad, d_pad) f32 layer-0 embeddings (loaded once, constant block)
    out_ref : (tm, d_pad)    f32 output row block (mean over layers)
    xbuf    : (2*n_pad, d_pad) bf16 resident x_l / x_{l+1} (parity halves)
    acc     : (n_pad, d_pad) f32 resident layer-mean accumulator
    blk_acc : (tm, d_pad)    f32 K-reduction accumulator
    """
    l = pl.program_id(0)
    i = pl.program_id(1)
    k = pl.program_id(2)
    nk = pl.num_programs(2)

    # One-time init: stage layer-0 embeddings into the resident scratch.
    @pl.when((l == 0) & (i == 0) & (k == 0))
    def _():
        x0 = x_ref[...]                              # (n_pad, d_pad) f32
        xbuf[:n_pad, :] = x0.astype(xbuf.dtype)      # parity-0 half = x_0
        acc[...] = x0                                # layer-0 term of the mean

    # Reset the K-reduction accumulator for this (layer, row-block).
    @pl.when(k == 0)
    def _():
        blk_acc[...] = jnp.zeros_like(blk_acc)

    # blk_acc += A[i, k] @ x_l[k]   (bf16 operands, f32 MXU accumulation).
    src = (l % 2) * n_pad
    x_blk = xbuf[pl.ds(pl.multiple_of(src + k * tk, tk), tk), :]
    blk_acc[...] += jnp.dot(a_ref[...], x_blk,
                            preferred_element_type=jnp.float32)

    # Finalize the row block: x_{l+1}[i] is ready -> update resident buffers.
    @pl.when(k == nk - 1)
    def _():
        new_x = blk_acc[...]                         # (tm, d_pad) f32
        row = pl.multiple_of(i * tm, tm)
        dst_row = pl.multiple_of(((l + 1) % 2) * n_pad + i * tm, tm)
        xbuf[pl.ds(dst_row, tm), :] = new_x.astype(xbuf.dtype)
        acc_new = acc[pl.ds(row, tm), :] + new_x
        acc[pl.ds(row, tm), :] = acc_new
        # Write the running mean every layer; the last layer's write is the
        # final value (also avoids flushing never-written VMEM on output
        # block turnover across layers).
        out_ref[...] = (acc_new * (1.0 / (num_layers + 1))).astype(out_ref.dtype)


def lightgcn_propagate(a_hat, x, num_layers, *, tm=512, tk=512,
                       act_dtype=jnp.bfloat16):
    """Fused LightGCN propagation: mean([x, A@x, ..., A^L @ x]).

    a_hat : (N, N) dense normalized adjacency (streamed as `act_dtype`)
    x     : (N, D) layer-0 embeddings
    """
    N, D = x.shape
    if num_layers == 0:
        return x.astype(jnp.float32)

    d_pad = _round_up(max(D, 128), 128)          # lane-dense stores / MXU width
    tile = math.lcm(tm, tk)
    n_pad = _round_up(N, tile)

    a_p = jnp.zeros((n_pad, n_pad), act_dtype).at[:N, :N].set(
        a_hat.astype(act_dtype))
    x_p = jnp.zeros((n_pad, d_pad), jnp.float32).at[:N, :D].set(
        x.astype(jnp.float32))

    grid = (num_layers, n_pad // tm, n_pad // tk)
    kernel = functools.partial(_lightgcn_kernel, num_layers=num_layers,
                               tm=tm, tk=tk, n_pad=n_pad)

    # Per-generation VMEM budget: ~75% of physical capacity, capped at 104 MiB
    # (=> ~96 MiB on v5e/v6e's 128 MiB, ~48 MiB on v7x's 64 MiB).
    try:
        vmem_cap = pltpu.get_tpu_info().vmem_capacity_bytes
        vmem_limit = min(int(vmem_cap * 3) // 4, 104 << 20)
    except Exception:
        vmem_limit = 32 << 20

    out = pl.pallas_call(
        kernel,
        out_shape=jax.ShapeDtypeStruct((n_pad, d_pad), jnp.float32),
        grid_spec=pltpu.PrefetchScalarGridSpec(
            num_scalar_prefetch=0,
            grid=grid,
            in_specs=[
                # bf16 A_hat tiles: streamed + double-buffered each layer.
                pl.BlockSpec((tm, tk), lambda l, i, k: (i, k)),
                # layer-0 x: constant block -> loaded once, no re-DMA.
                pl.BlockSpec((n_pad, d_pad), lambda l, i, k: (0, 0)),
            ],
            out_specs=pl.BlockSpec((tm, d_pad), lambda l, i, k: (i, 0)),
            scratch_shapes=[
                pltpu.VMEM((2 * n_pad, d_pad), act_dtype),   # x_l / x_{l+1}
                pltpu.VMEM((n_pad, d_pad), jnp.float32),     # layer-mean acc
                pltpu.VMEM((tm, d_pad), jnp.float32),        # K-reduction acc
            ]),
        compiler_params=pltpu.CompilerParams(
            # All 'arbitrary': every row block of layer l+1 depends on all row
            # blocks of layer l through the resident xbuf scratch, so no grid
            # axis may be sharded across cores.
            dimension_semantics=("arbitrary", "arbitrary", "arbitrary"),
            vmem_limit_bytes=vmem_limit),
    )(a_p, x_p)
    return out[:N, :D]


# ----------------------------------------------------------------------------
# Model wrapper (glue in plain JAX: degrees, normalization, dense adjacency)
# ----------------------------------------------------------------------------
class LightGCN:
    def __init__(self, num_users, num_items, embedding_dim, num_layers,
                 weight_decay, key):
        self.num_users = num_users
        self.num_items = num_items
        self.embedding_dim = embedding_dim
        self.num_layers = num_layers
        self.weight_decay = weight_decay
        n = num_users + num_items
        # xavier_uniform init of nn.Embedding(n, D).weight:
        # bound = sqrt(6 / (fan_in + fan_out)) with fan_in=D, fan_out=n
        bound = (6.0 / (embedding_dim + n)) ** 0.5
        self.embedding_weight = jax.random.uniform(
            key, (n, embedding_dim), dtype=jnp.float32,
            minval=-bound, maxval=bound)

    def _build_norm_adjacency(self, edge_index):
        """Dense A_hat with (A_hat @ x)[col] += norm * x[row] per edge
        (matches PyG 'add' aggregation of norm * x_j into the target col)."""
        n = self.num_users + self.num_items
        row, col = edge_index[0], edge_index[1]
        ones = jnp.ones(row.shape, dtype=jnp.float32)
        deg_row = jnp.zeros((n,), jnp.float32).at[row].add(ones)
        deg_col = jnp.zeros((n,), jnp.float32).at[col].add(ones)
        deg_row_inv_sqrt = jnp.where(deg_row > 0, deg_row ** -0.5, 0.0)
        deg_col_inv_sqrt = jnp.where(deg_col > 0, deg_col ** -0.5, 0.0)
        norm = deg_row_inv_sqrt[row] * deg_col_inv_sqrt[col]
        a_hat = jnp.zeros((n, n), jnp.float32).at[col, row].add(norm)
        return a_hat

    def forward(self, edge_index, *, tm=512, tk=512, act_dtype=jnp.bfloat16):
        a_hat = self._build_norm_adjacency(edge_index)
        final_embeddings = lightgcn_propagate(
            a_hat, self.embedding_weight, self.num_layers,
            tm=tm, tk=tk, act_dtype=act_dtype)
        user_embeds = final_embeddings[: self.num_users]
        item_embeds = final_embeddings[self.num_users:]
        return user_embeds, item_embeds

    # Plain-JAX auxiliary losses (no kernel needed).
    def bpr_loss(self, user_embeds_batch, all_item_embeds,
                 pos_item_indices, neg_item_indices):
        pos = all_item_embeds[pos_item_indices]
        neg = all_item_embeds[neg_item_indices]
        pos_scores = jnp.sum(user_embeds_batch * pos, axis=1)
        neg_scores = jnp.sum(user_embeds_batch * neg, axis=1)
        return -jnp.mean(jnp.log(jax.nn.sigmoid(pos_scores - neg_scores) + 1e-8))

    def regularization_loss(self):
        w = self.embedding_weight
        return self.weight_decay * jnp.sum(w * w) / 2.0


# ----------------------------------------------------------------------------
# Pure-JAX reference (mimics the kernel's bf16 rounding of A and activations)
# ----------------------------------------------------------------------------
def _reference_forward(model, edge_index, act_dtype=jnp.bfloat16):
    a = model._build_norm_adjacency(edge_index)
    a = a.astype(act_dtype).astype(jnp.float32)
    x = model.embedding_weight
    acc = x
    cur = x
    for _ in range(model.num_layers):
        cur = jnp.dot(a, cur.astype(act_dtype).astype(jnp.float32),
                      precision=jax.lax.Precision.HIGHEST)
        acc = acc + cur
    final = acc / (model.num_layers + 1)
    return final[: model.num_users], final[model.num_users:]


if __name__ == "__main__":
    key = jax.random.PRNGKey(0)
    k_emb, k_edges = jax.random.split(key)

    num_users, num_items = 96, 96
    embedding_dim = 32
    num_layers = 3

    model = LightGCN(num_users, num_items, embedding_dim, num_layers,
                     weight_decay=1e-4, key=k_emb)

    # Deterministic synthetic bipartite interaction graph (both directions).
    num_interactions = 256
    ku, ki = jax.random.split(k_edges)
    u = jax.random.randint(ku, (num_interactions,), 0, num_users)
    it = jax.random.randint(ki, (num_interactions,), 0, num_items) + num_users
    row = jnp.concatenate([u, it])
    col = jnp.concatenate([it, u])
    edge_index = jnp.stack([row, col], axis=0).astype(jnp.int32)  # (2, 2E)

    # Small 128x128 tiles at toy size so the (layer, row-block, k-block) grid
    # and the parity/accumulator logic are actually exercised
    # (production defaults are 512x512).
    user_embeds, item_embeds = model.forward(edge_index, tm=128, tk=128)
    jax.block_until_ready((user_embeds, item_embeds))

    assert user_embeds.shape == (num_users, embedding_dim)
    assert item_embeds.shape == (num_items, embedding_dim)

    # Sanity check. Tolerance accounts for bf16 rounding of activations
    # between layers (the reference mimics the same rounding, but boundary
    # effects can differ by ~1 bf16 ulp).
    ref_user, ref_item = _reference_forward(model, edge_index)
    assert jnp.allclose(user_embeds, ref_user, atol=3e-3, rtol=3e-2), \
        float(jnp.max(jnp.abs(user_embeds - ref_user)))
    assert jnp.allclose(item_embeds, ref_item, atol=3e-3, rtol=3e-2), \
        float(jnp.max(jnp.abs(item_embeds - ref_item)))

    print("KERNEL_OK")
</pallas_src>

<mosaic_0001>
module attributes {stable_mosaic.version = 11 : i64} {
  func.func @_lightgcn_kernel(%arg0: i32, %arg1: i32, %arg2: i32, %arg3: memref<128x128xbf16, #tpu.memory_space<vmem>>, %arg4: memref<256x128xf32, #tpu.memory_space<vmem>>, %arg5: memref<128x128xf32, #tpu.memory_space<vmem>>, %arg6: memref<512x128xbf16, #tpu.memory_space<vmem>>, %arg7: memref<256x128xf32, #tpu.memory_space<vmem>>, %arg8: memref<128x128xf32, #tpu.memory_space<vmem>>) attributes {dimension_semantics = [#tpu.dimension_semantics<arbitrary>, #tpu.dimension_semantics<arbitrary>, #tpu.dimension_semantics<arbitrary>], iteration_bounds = array<i64: 3, 2, 2>, scalar_prefetch = 0 : i64, scratch_operands = 3 : i64, tpu.core_type = #tpu.core_type<tc>, window_params = [{transform_indices = @transform_0, window_bounds = array<i64: 128, 128>}, {pipeline_mode = #tpu.pipeline_mode<synchronous>, transform_indices = @transform_1, window_bounds = array<i64: 256, 128>}, {transform_indices = @transform_2, window_bounds = array<i64: 128, 128>}]} {
    %c0_i32 = arith.constant 0 : i32
    %0 = arith.cmpi eq, %arg0, %c0_i32 : i32
    %c0_i32_0 = arith.constant 0 : i32
    %1 = arith.cmpi eq, %arg1, %c0_i32_0 : i32
    %2 = arith.andi %0, %1 : i1
    %c0_i32_1 = arith.constant 0 : i32
    %3 = arith.cmpi eq, %arg2, %c0_i32_1 : i32
    %4 = arith.andi %2, %3 : i1
    %5 = arith.extui %4 : i1 to i32
    %c0_i32_2 = arith.constant 0 : i32
    %6 = arith.cmpi ne, %5, %c0_i32_2 : i32
    scf.if %6 {
      %c0_17 = arith.constant 0 : index
      %c0_18 = arith.constant 0 : index
      %34 = vector.load %arg4[%c0_17, %c0_18] : memref<256x128xf32, #tpu.memory_space<vmem>>, vector<256x128xf32>
      %35 = arith.truncf %34 : vector<256x128xf32> to vector<256x128xbf16>
      %c0_19 = arith.constant 0 : index
      %c0_20 = arith.constant 0 : index
      %36 = vector.load %arg6[%c0_19, %c0_20] : memref<512x128xbf16, #tpu.memory_space<vmem>>, vector<256x128xbf16>
      tpu.vector_store %arg6[%c0_19, %c0_20], %35 {strides = array<i32>} : memref<512x128xbf16, #tpu.memory_space<vmem>>, vector<256x128xbf16>,
      %c0_21 = arith.constant 0 : index
      %c0_22 = arith.constant 0 : index
      %37 = vector.load %arg7[%c0_21, %c0_22] : memref<256x128xf32, #tpu.memory_space<vmem>>, vector<256x128xf32>
      tpu.vector_store %arg7[%c0_21, %c0_22], %34 {strides = array<i32>} : memref<256x128xf32, #tpu.memory_space<vmem>>, vector<256x128xf32>,
    } else {
    }
    %c0_i32_3 = arith.constant 0 : i32
    %7 = arith.cmpi eq, %arg2, %c0_i32_3 : i32
    %8 = arith.extui %7 : i1 to i32
    %c0_i32_4 = arith.constant 0 : i32
    %9 = arith.cmpi ne, %8, %c0_i32_4 : i32
    scf.if %9 {
      %cst_17 = arith.constant 0.000000e+00 : f32
      %34 = vector.broadcast %cst_17 : f32 to vector<128x128xf32>
      %c0_18 = arith.constant 0 : index
      %c0_19 = arith.constant 0 : index
      %35 = vector.load %arg8[%c0_18, %c0_19] : memref<128x128xf32, #tpu.memory_space<vmem>>, vector<128x128xf32>
      tpu.vector_store %arg8[%c0_18, %c0_19], %34 {strides = array<i32>} : memref<128x128xf32, #tpu.memory_space<vmem>>, vector<128x128xf32>,
    } else {
    }
    %c2_i32 = arith.constant 2 : i32
    %c0_i32_5 = arith.constant 0 : i32
    %10 = arith.cmpi eq, %c2_i32, %c0_i32_5 : i32
    %c1_i32 = arith.constant 1 : i32
    %11 = arith.select %10, %c1_i32, %c2_i32 : i32
    %12 = arith.remsi %arg0, %11 : i32
    %c0_i32_6 = arith.constant 0 : i32
    %13 = arith.cmpi ne, %12, %c0_i32_6 : i32
    %c0_i32_7 = arith.constant 0 : i32
    %14 = arith.cmpi slt, %12, %c0_i32_7 : i32
    %c0_i32_8 = arith.constant 0 : i32
    %15 = arith.cmpi slt, %11, %c0_i32_8 : i32
    %16 = arith.xori %14, %15 : i1
    %17 = arith.andi %16, %13 : i1
    %18 = arith.addi %12, %11 : i32
    %19 = arith.select %17, %18, %12 : i32
    %c256_i32 = arith.constant 256 : i32
    %20 = arith.muli %19, %c256_i32 : i32
    %c128_i32 = arith.constant 128 : i32
    %21 = arith.muli %arg2, %c128_i32 : i32
    %22 = arith.addi %20, %21 : i32
    %23 = tpu.assume_multiple %22, 128 : i32
    %24 = arith.index_cast %23 : i32 to index
    %c0 = arith.constant 0 : index
    %25 = vector.load %arg6[%24, %c0] : memref<512x128xbf16, #tpu.memory_space<vmem>>, vector<128x128xbf16>
    %c0_9 = arith.constant 0 : index
    %c0_10 = arith.constant 0 : index
    %26 = vector.load %arg8[%c0_9, %c0_10] : memref<128x128xf32, #tpu.memory_space<vmem>>, vector<128x128xf32>
    %c0_11 = arith.constant 0 : index
    %c0_12 = arith.constant 0 : index
    %27 = vector.load %arg3[%c0_11, %c0_12] : memref<128x128xbf16, #tpu.memory_space<vmem>>, vector<128x128xbf16>
    %cst = arith.constant dense<0.000000e+00> : vector<128x128xf32>
    %28 = tpu.matmul %27, %25, %cst {dimension_numbers = #tpu.dot_dimension_numbers<[1], [0], [0], [1], [0, 0, 1, 1], [], []>} : vector<128x128xbf16>, vector<128x128xbf16>, vector<128x128xf32> -> vector<128x128xf32>
    %29 = arith.addf %26, %28 : vector<128x128xf32>
    %c0_13 = arith.constant 0 : index
    %c0_14 = arith.constant 0 : index
    %30 = vector.load %arg8[%c0_13, %c0_14] : memref<128x128xf32, #tpu.memory_space<vmem>>, vector<128x128xf32>
    tpu.vector_store %arg8[%c0_13, %c0_14], %29 {strides = array<i32>} : memref<128x128xf32, #tpu.memory_space<vmem>>, vector<128x128xf32>,
    %c1_i32_15 = arith.constant 1 : i32
    %31 = arith.cmpi eq, %arg2, %c1_i32_15 : i32
    %32 = arith.extui %31 : i1 to i32
    %c0_i32_16 = arith.constant 0 : i32
    %33 = arith.cmpi ne, %32, %c0_i32_16 : i32
    scf.if %33 {
      %c0_17 = arith.constant 0 : index
      %c0_18 = arith.constant 0 : index
      %34 = vector.load %arg8[%c0_17, %c0_18] : memref<128x128xf32, #tpu.memory_space<vmem>>, vector<128x128xf32>
      %c128_i32_19 = arith.constant 128 : i32
      %35 = arith.muli %arg1, %c128_i32_19 : i32
      %36 = tpu.assume_multiple %35, 128 : i32
      %c1_i32_20 = arith.constant 1 : i32
      %37 = arith.addi %arg0, %c1_i32_20 : i32
      %c2_i32_21 = arith.constant 2 : i32
      %c0_i32_22 = arith.constant 0 : i32
      %38 = arith.cmpi eq, %c2_i32_21, %c0_i32_22 : i32
      %c1_i32_23 = arith.constant 1 : i32
      %39 = arith.select %38, %c1_i32_23, %c2_i32_21 : i32
      %40 = arith.remsi %37, %39 : i32
      %c0_i32_24 = arith.constant 0 : i32
      %41 = arith.cmpi ne, %40, %c0_i32_24 : i32
      %c0_i32_25 = arith.constant 0 : i32
      %42 = arith.cmpi slt, %40, %c0_i32_25 : i32
      %c0_i32_26 = arith.constant 0 : i32
      %43 = arith.cmpi slt, %39, %c0_i32_26 : i32
      %44 = arith.xori %42, %43 : i1
      %45 = arith.andi %44, %41 : i1
      %46 = arith.addi %40, %39 : i32
      %47 = arith.select %45, %46, %40 : i32
      %c256_i32_27 = arith.constant 256 : i32
      %48 = arith.muli %47, %c256_i32_27 : i32
      %c128_i32_28 = arith.constant 128 : i32
      %49 = arith.muli %arg1, %c128_i32_28 : i32
      %50 = arith.addi %48, %49 : i32
      %51 = tpu.assume_multiple %50, 128 : i32
      %52 = arith.truncf %34 : vector<128x128xf32> to vector<128x128xbf16>
      %53 = arith.index_cast %51 : i32 to index
      %c0_29 = arith.constant 0 : index
      %54 = vector.load %arg6[%53, %c0_29] : memref<512x128xbf16, #tpu.memory_space<vmem>>, vector<128x128xbf16>
      tpu.vector_store %arg6[%53, %c0_29], %52 {strides = array<i32>} : memref<512x128xbf16, #tpu.memory_space<vmem>>, vector<128x128xbf16>,
      %55 = arith.index_cast %36 : i32 to index
      %c0_30 = arith.constant 0 : index
      %56 = vector.load %arg7[%55, %c0_30] : memref<256x128xf32, #tpu.memory_space<vmem>>, vector<128x128xf32>
      %57 = arith.addf %56, %34 : vector<128x128xf32>
      %58 = arith.index_cast %36 : i32 to index
      %c0_31 = arith.constant 0 : index
      %59 = vector.load %arg7[%58, %c0_31] : memref<256x128xf32, #tpu.memory_space<vmem>>, vector<128x128xf32>
      tpu.vector_store %arg7[%58, %c0_31], %57 {strides = array<i32>} : memref<256x128xf32, #tpu.memory_space<vmem>>, vector<128x128xf32>,
      %cst_32 = arith.constant 2.500000e-01 : f32
      %60 = vector.broadcast %cst_32 : f32 to vector<128x128xf32>
      %61 = arith.mulf %57, %60 : vector<128x128xf32>
      %c0_33 = arith.constant 0 : index
      %c0_34 = arith.constant 0 : index
      %62 = vector.load %arg5[%c0_33, %c0_34] : memref<128x128xf32, #tpu.memory_space<vmem>>, vector<128x128xf32>
      tpu.vector_store %arg5[%c0_33, %c0_34], %61 {strides = array<i32>} : memref<128x128xf32, #tpu.memory_space<vmem>>, vector<128x128xf32>,
    } else {
    }
    return
  }
  func.func @transform_0(%arg0: i32, %arg1: i32, %arg2: i32) -> (i32, i32) {
    %c0_i32 = arith.constant 0 : i32
    return %arg1, %arg2 : i32, i32
  }
  func.func @transform_1(%arg0: i32, %arg1: i32, %arg2: i32) -> (i32, i32) {
    %c0_i32 = arith.constant 0 : i32
    %c0_i32_0 = arith.constant 0 : i32
    %c0_i32_1 = arith.constant 0 : i32
    return %c0_i32, %c0_i32_0 : i32, i32
  }
  func.func @transform_2(%arg0: i32, %arg1: i32, %arg2: i32) -> (i32, i32) {
    %c0_i32 = arith.constant 0 : i32
    %c0_i32_0 = arith.constant 0 : i32
    return %arg1, %c0_i32 : i32, i32
  }
}

</mosaic_0001>

<llo_original>
// kernel: tpu_custom_call.1
$region0: #{tpu_custom_call.1}
  #allocation0 [shape = 'u32[]', space=smem, size = 0x4, offset = 0x4, fixed_abs, tag = 'smem constant byte address 0x4 - core index']
  #allocation1 [shape = 'u32[144,128]{1,0:T(1,128)}', space=vmem, size = 0x12000, scoped, tag = 'internal scratch']
  #allocation2 [shape = 'bf16[512,128]{1,0:T(16,128)(2,1)}', space=vmem, size = 0x20000, scoped, tag = 'scratch operand']
  #allocation3 [shape = 'f32[256,128]{1,0:T(8,128)}', space=vmem, size = 0x20000, scoped, tag = 'scratch operand']
  #allocation4 [shape = 'f32[128,128]{1,0:T(8,128)}', space=vmem, size = 0x10000, scoped, tag = 'scratch operand']
  %s0 = inlined_call_operand.hbm [shape: bf16[256,256], index: 0, kind: input, shape index: {}]
  %s1 = inlined_call_operand.hbm [shape: f32[256,128], index: 1, kind: input, shape index: {}]
  %s2 = inlined_call_operand.hbm [shape: f32[256,128], index: 2, kind: output, shape index: {}]
  %s3 = sld [smem:[#allocation0]]
  $region61: #{tpu_custom_call.1} parent=0
    _
  %s5 = ssub.s32 1, %s3
  %s6 = scalar_select 0, %s5, %s3
  $region1: #{tpu_custom_call.1} parent=0
    #allocation5 [shape = 'u8[65536]{0}', space=vmem, size = 0x10000, scoped, tag = 'input window, operand 0']
    #allocation6 [shape = 's32[2]{0}', space=sflag, size = 0x8, scoped, tag = 'scoped memory for tpu_custom_call.1']
    #allocation7 [shape = 's32[2]{0}', space=sflag, size = 0x8, scoped, tag = 'scoped memory for tpu_custom_call.1']
    #allocation8 [shape = 'u8[131072]{0}', space=vmem, size = 0x20000, scoped, tag = 'input window, operand 1, single buffered']
    #allocation9 [shape = 's32[1]{0}', space=sflag, size = 0x4, scoped, tag = 'scoped memory for tpu_custom_call.1']
    #allocation10 [shape = 'u8[131072]{0}', space=vmem, size = 0x20000, scoped, tag = 'output window, operand 0']
    %7 = vsyncpa [#allocation6], 0
    %s8 = scalar_lea.sflag [#allocation6], 1
    %9 = vsyncpa %s8, 0
    %10 = vsyncpa [#allocation9], 0
    %11 = vsyncpa [#allocation7], 0
    %s12 = scalar_lea.sflag [#allocation7], 1
    %13 = vsyncpa %s12, 0
    loop: start=0, step=1, limit=14
    $region2: #{tpu_custom_call.1} parent=1 // loop_pre_header
      _
    $region3: #{tpu_custom_call.1} parent=1 // loop_header
      %s15 = sphi 0, %s19
      %p16 = scmp.ge.s32.totalorder %s15, 14
      %s22 = sphi 0, %s41
      %s23 = sphi 0, %s37
      %s24 = sphi 0, %s33
      %s25 = sphi 0, %s22
      %s26 = sphi 0, %s23
      %s27 = sphi 0, %s24
      %s28 = sphi 0, %s25
      %s29 = sphi 0, %s26
      %s30 = sphi 0, %s27
      %s46 = sphi 0, %s48
      %s49 = sphi 0, %s46
      %s50 = sphi 0, %s49
      %s66 = sphi 0, %s50
      %s70 = sphi 0, %s70
      %s72 = sphi 0, %s70
      %s73 = sphi 0, %s72
      %s87 = sphi 0, %s73
      %s93 = sphi 0, %s95
      %s96 = sphi 0, %s93
      %s97 = sphi 0, %s96
      %s113 = sphi 0, %s97
    $region4: #{tpu_custom_call.1} parent=1 // loop_header_branch
      %18 = sbr.rel (%p16) target = $region8
    $region5: #{tpu_custom_call.1} parent=1 // loop_body
      %s20 = ssub.s32 %s15, 1
      %s21 = ssub.s32 %s15, 2
      %s31 = sadd.s32 1, %s24
      %p32 = scmp.ge.s32.totalorder %s31, 2
      %s33 = scalar_select %p32, 0, %s31
      %s34 = sadd.s32 1, %s23
      %s35 = scalar_select %p32, %s34, %s23
      %p36 = scmp.ge.s32.totalorder %s35, 2
      %s37 = scalar_select %p36, 0, %s35
      %s38 = sadd.s32 1, %s22
      %s39 = scalar_select %p36, %s38, %s22
      %p40 = scmp.ge.s32.totalorder %s39, 3
      %s41 = scalar_select %p40, 0, %s39
      %s42 = ssub.s32 %s23, %s37
      %s43 = ssub.s32 %s24, %s33
      %s44 = sor.u32 %s42, %s43
      %p45 = scmp.eq.s32.totalorder %s44, 0
      %s47 = sadd.s32 %s46, 1
      %s48 = scalar_select %p45, %s46, %s47
      %p51 = pneg %p45
      %p52 = scmp.eq.s32.totalorder %s15, 11
      %p53 = por %p51, %p52
      %p54 = scmp.ne.s32.totalorder %s46, %s49
      %p55 = scmp.eq.s32.totalorder %s15, 0
      %p56 = por %p54, %p55
      %p57 = scmp.ne.s32.totalorder %s46, %s49
      %p58 = scmp.eq.s32.totalorder %s20, 11
      %p59 = por %p57, %p58
      %p60 = scmp.ne.s32.totalorder %s49, %s50
      %p61 = scmp.eq.s32.totalorder %s20, 0
      %p62 = por %p60, %p61
      %p63 = scmp.ne.s32.totalorder %s49, %s50
      %p64 = scmp.eq.s32.totalorder %s21, 11
      %p65 = por %p63, %p64
      %p67 = scmp.ne.s32.totalorder %s50, %s66
      %p68 = scmp.eq.s32.totalorder %s21, 0
      %p69 = por %p67, %p68
      %s71 = sadd.s32 %s70, 1
      %p74 = scmp.eq.s32.totalorder %s15, 11
      %p75 = scmp.ne.s32.totalorder %s70, %s72
      %p76 = scmp.eq.s32.totalorder %s15, 0
      %p77 = por %p75, %p76
      %p78 = scmp.ne.s32.totalorder %s70, %s72
      %p79 = scmp.eq.s32.totalorder %s20, 11
      %p80 = por %p78, %p79
      %p81 = scmp.ne.s32.totalorder %s72, %s73
      %p82 = scmp.eq.s32.totalorder %s20, 0
      %p83 = por %p81, %p82
      %p84 = scmp.ne.s32.totalorder %s72, %s73
      %p85 = scmp.eq.s32.totalorder %s21, 11
      %p86 = por %p84, %p85
      %p88 = scmp.ne.s32.totalorder %s73, %s87
      %p89 = scmp.eq.s32.totalorder %s21, 0
      %p90 = por %p88, %p89
      %s91 = ssub.s32 %s23, %s37
      %p92 = scmp.eq.s32.totalorder %s91, 0
      %s94 = sadd.s32 %s93, 1
      %s95 = scalar_select %p92, %s93, %s94
      %p98 = pneg %p92
      %p99 = scmp.eq.s32.totalorder %s15, 11
      %p100 = por %p98, %p99
      %p101 = scmp.ne.s32.totalorder %s93, %s96
      %p102 = scmp.eq.s32.totalorder %s15, 0
      %p103 = por %p101, %p102
      %p104 = scmp.ne.s32.totalorder %s93, %s96
      %p105 = scmp.eq.s32.totalorder %s20, 11
      %p106 = por %p104, %p105
      %p107 = scmp.ne.s32.totalorder %s96, %s97
      %p108 = scmp.eq.s32.totalorder %s20, 0
      %p109 = por %p107, %p108
      %p110 = scmp.ne.s32.totalorder %s96, %s97
      %p111 = scmp.eq.s32.totalorder %s21, 11
      %p112 = por %p110, %p111
      %p114 = scmp.ne.s32.totalorder %s97, %s113
      %p115 = scmp.eq.s32.totalorder %s21, 0
      %p116 = por %p114, %p115
      %p117 = scmp.le.s32.totalorder 1, %s15
      %p118 = scmp.lt.s32.totalorder %s15, 13
      %p119 = pnand %p117, %p118
      %p120 = pneg %p119
      // Predicated region
      $region9: #{tpu_custom_call.1} parent=5 // pred_check
        _
      $region10: #{tpu_custom_call.1} parent=5 // pred_check_branch
        %122 = sbr.rel (%p119) target = $region12
      $region11: #{tpu_custom_call.1} parent=5 // pred_region
        %s123 = ssub.s32 %s15, 1
        // Predicated region
        $region13: #{tpu_custom_call.1} parent=11 // pred_check
          %p124 = pneg %p83
        $region14: #{tpu_custom_call.1} parent=11 // pred_check_branch
          %126 = sbr.rel (%p124) target = $region16
        $region15: #{tpu_custom_call.1} parent=11 // pred_region
          %s128 = ssub.s32 4096, 4096
          %129 = vsyncadd [#allocation9], %s128
          %s130 = sshll.u32 [#allocation8], 4
          %s131 = int_to_ptr.vmem [resolvable:$true] %s130
          %136 = dma.hbm_to_vmem [thread:$0]  %s1, 4096, %s131, [#allocation9], 128, 128, 8
        $region16: #{tpu_custom_call.1} parent=11 // pred_fallthru
          _
      $region12: #{tpu_custom_call.1} parent=5 // pred_fallthru
        _
      %p137 = scmp.lt.s32.totalorder %s15, 12
      // Predicated region
      $region17: #{tpu_custom_call.1} parent=5 // pred_check
        %p138 = pneg %p137
      $region18: #{tpu_custom_call.1} parent=5 // pred_check_branch
        %140 = sbr.rel (%p138) target = $region20
      $region19: #{tpu_custom_call.1} parent=5 // pred_region
        // Predicated region
        $region21: #{tpu_custom_call.1} parent=19 // pred_check
          %p141 = pneg %p56
        $region22: #{tpu_custom_call.1} parent=19 // pred_check_branch
          %143 = sbr.rel (%p141) target = $region24
        $region23: #{tpu_custom_call.1} parent=19 // pred_region
          %s144 = sand.u32 %s46, 1
          %s145 = scalar_lea.sflag [#allocation6], %s144
          %s146 = sand.u32 %s46, 1
          %s147 = smul.addr %s146, 64
          %s148 = scalar_lea.vmem [#allocation5], %s147
          %s149 = smul.u32 16, %s23
          %s151 = ssub.s32 1024, 1024
          %152 = vsyncadd %s145, %s151
          %s153 = smul.addr %s149, 2
          %s154 = sadd.s32 %s24, %s153
          %s155 = smul.addr %s154, 64
          %s156 = scalar_lea.hbm %s0, %s155
          %s157 = sshll.u32 %s148, 4
          %s158 = int_to_ptr.vmem [resolvable:$true] %s157
          %163 = dma.hbm_to_vmem [thread:$0]  %s156, 1024, %s158, %s145, 128, 64, 4
        $region24: #{tpu_custom_call.1} parent=19 // pred_fallthru
          _
      $region20: #{tpu_custom_call.1} parent=5 // pred_fallthru
        _
      %p164 = scmp.le.s32.totalorder 1, %s15
      %p165 = scmp.lt.s32.totalorder %s15, 13
      %p166 = pnand %p164, %p165
      %p167 = pneg %p166
      // Predicated region
      $region25: #{tpu_custom_call.1} parent=5 // pred_check
        _
      $region26: #{tpu_custom_call.1} parent=5 // pred_check_branch
        %169 = sbr.rel (%p166) target = $region28
      $region27: #{tpu_custom_call.1} parent=5 // pred_region
        %s170 = ssub.s32 %s15, 1
        %s171 = sand.u32 %s49, 1
        %s172 = scalar_lea.sflag [#allocation6], %s171
        %s173 = sand.u32 %s49, 1
        %s174 = smul.addr %s173, 64
        %s175 = scalar_lea.vmem [#allocation5], %s174
        // Predicated region
        $region29: #{tpu_custom_call.1} parent=27 // pred_check
          %p176 = pneg %p62
        $region30: #{tpu_custom_call.1} parent=27 // pred_check_branch
          %178 = sbr.rel (%p176) target = $region32
        $region31: #{tpu_custom_call.1} parent=27 // pred_region
          %179 = dma.done %s172, 1024
        $region32: #{tpu_custom_call.1} parent=27 // pred_fallthru
          _
        // Predicated region
        $region33: #{tpu_custom_call.1} parent=27 // pred_check
          %p180 = pneg %p83
        $region34: #{tpu_custom_call.1} parent=27 // pred_check_branch
          %182 = sbr.rel (%p180) target = $region36
        $region35: #{tpu_custom_call.1} parent=27 // pred_region
          %183 = dma.done [#allocation9], 4096
        $region36: #{tpu_custom_call.1} parent=27 // pred_fallthru
          _
        %s184 = sand.u32 %s49, 1
        %s185 = scalar_lea.sflag [#allocation6], %s184
        %s186 = sand.u32 %s49, 1
        %s187 = smul.addr %s186, 64
        %s188 = scalar_lea.vmem [#allocation5], %s187
        %p189 = pneg %p62
        %p190 = pneg %p59
        %p191 = pneg %p83
        %p192 = pneg %p80
        %p193 = pneg %p109
        %p194 = pneg %p106
        %s195 = sand.u32 %s96, 1
        %s196 = scalar_lea.sflag [#allocation7], %s195
        %s197 = sand.u32 %s96, 1
        %s198 = smul.addr %s197, 128
        %s199 = scalar_lea.vmem [#allocation10], %s198
        %s200 = smul.u32 16, %s26
        %s201 = smul.u32 16, %s26
        %p203 = scmp.eq.s32.totalorder %s25, 0
        %p204 = scmp.eq.s32.totalorder %s26, 0
        %p205 = pnand %p203, %p204
        %p206 = pneg %p205
        %p207 = scmp.eq.s32.totalorder %s27, 0
        %p208 = pnand %p206, %p207
        %p209 = pneg %p208
        // Predicated region
        $region37: #{tpu_custom_call.1} parent=27 // pred_check
          _
        $region38: #{tpu_custom_call.1} parent=27 // pred_check_branch
          %211 = sbr.rel (%p208) target = $region40
        $region39: #{tpu_custom_call.1} parent=27 // pred_region
          %v212 = vld [vmem:[#allocation8] sm:$0xff]
          %v213 = vld [vmem:[#allocation8 + $0x8] sm:$0xff]
          %v214 = vld [vmem:[#allocation8 + $0x10] sm:$0xff]
          %v215 = vld [vmem:[#allocation8 + $0x18] sm:$0xff]
          %v216 = vld [vmem:[#allocation8 + $0x20] sm:$0xff]
          %v217 = vld [vmem:[#allocation8 + $0x28] sm:$0xff]
          %v218 = vld [vmem:[#allocation8 + $0x30] sm:$0xff]
          %v219 = vld [vmem:[#allocation8 + $0x38] sm:$0xff]
          %v220 = vld [vmem:[#allocation8 + $0x40] sm:$0xff]
          %v221 = vld [vmem:[#allocation8 + $0x48] sm:$0xff]
          %v222 = vld [vmem:[#allocation8 + $0x50] sm:$0xff]
          %v223 = vld [vmem:[#allocation8 + $0x58] sm:$0xff]
          %v224 = vld [vmem:[#allocation8 + $0x60] sm:$0xff]
          %v225 = vld [vmem:[#allocation8 + $0x68] sm:$0xff]
          %v226 = vld [vmem:[#allocation8 + $0x70] sm:$0xff]
          %v227 = vld [vmem:[#allocation8 + $0x78] sm:$0xff]
          %v228 = vld [vmem:[#allocation8 + $0x80] sm:$0xff]
          %v229 = vld [vmem:[#allocation8 + $0x88] sm:$0xff]
          %v230 = vld [vmem:[#allocation8 + $0x90] sm:$0xff]
          %v231 = vld [vmem:[#allocation8 + $0x98] sm:$0xff]
          %v232 = vld [vmem:[#allocation8 + $0xa0] sm:$0xff]
          %v233 = vld [vmem:[#allocation8 + $0xa8] sm:$0xff]
          %v234 = vld [vmem:[#allocation8 + $0xb0] sm:$0xff]
          %v235 = vld [vmem:[#allocation8 + $0xb8] sm:$0xff]
          %v236 = vld [vmem:[#allocation8 + $0xc0] sm:$0xff]
          %v237 = vld [vmem:[#allocation8 + $0xc8] sm:$0xff]
          %v238 = vld [vmem:[#allocation8 + $0xd0] sm:$0xff]
          %v239 = vld [vmem:[#allocation8 + $0xd8] sm:$0xff]
          %v240 = vld [vmem:[#allocation8 + $0xe0] sm:$0xff]
          %v241 = vld [vmem:[#allocation8 + $0xe8] sm:$0xff]
          %v242 = vld [vmem:[#allocation8 + $0xf0] sm:$0xff]
          %v243 = vld [vmem:[#allocation8 + $0xf8] sm:$0xff]
          %v244 = vpack.c.bf16 %v213, %v212
          %v245 = vpack.c.bf16 %v215, %v214
          %v246 = vpack.c.bf16 %v217, %v216
          %v247 = vpack.c.bf16 %v219, %v218
          %v248 = vpack.c.bf16 %v221, %v220
          %v249 = vpack.c.bf16 %v223, %v222
          %v250 = vpack.c.bf16 %v225, %v224
          %v251 = vpack.c.bf16 %v227, %v226
          %v252 = vpack.c.bf16 %v229, %v228
          %v253 = vpack.c.bf16 %v231, %v230
          %v254 = vpack.c.bf16 %v233, %v232
          %v255 = vpack.c.bf16 %v235, %v234
          %v256 = vpack.c.bf16 %v237, %v236
          %v257 = vpack.c.bf16 %v239, %v238
          %v258 = vpack.c.bf16 %v241, %v240
          %v259 = vpack.c.bf16 %v243, %v242
          %260 = vst [vmem:[#allocation2] sm:$0xff] %v244
          %261 = vst [vmem:[#allocation2 + $0x8] sm:$0xff] %v245
          %262 = vst [vmem:[#allocation2 + $0x10] sm:$0xff] %v246
          %263 = vst [vmem:[#allocation2 + $0x18] sm:$0xff] %v247
          %264 = vst [vmem:[#allocation2 + $0x20] sm:$0xff] %v248
          %265 = vst [vmem:[#allocation2 + $0x28] sm:$0xff] %v249
          %266 = vst [vmem:[#allocation2 + $0x30] sm:$0xff] %v250
          %267 = vst [vmem:[#allocation2 + $0x38] sm:$0xff] %v251
          %268 = vst [vmem:[#allocation2 + $0x40] sm:$0xff] %v252
          %269 = vst [vmem:[#allocation2 + $0x48] sm:$0xff] %v253
          %270 = vst [vmem:[#allocation2 + $0x50] sm:$0xff] %v254
          %271 = vst [vmem:[#allocation2 + $0x58] sm:$0xff] %v255
          %272 = vst [vmem:[#allocation2 + $0x60] sm:$0xff] %v256
          %273 = vst [vmem:[#allocation2 + $0x68] sm:$0xff] %v257
          %274 = vst [vmem:[#allocation2 + $0x70] sm:$0xff] %v258
          %275 = vst [vmem:[#allocation2 + $0x78] sm:$0xff] %v259
          %276 = vst [vmem:[#allocation3] sm:$0xff] %v212
          %277 = vst [vmem:[#allocation3 + $0x8] sm:$0xff] %v213
          %278 = vst [vmem:[#allocation3 + $0x10] sm:$0xff] %v214
          %279 = vst [vmem:[#allocation3 + $0x18] sm:$0xff] %v215
          %280 = vst [vmem:[#allocation3 + $0x20] sm:$0xff] %v216
          %281 = vst [vmem:[#allocation3 + $0x28] sm:$0xff] %v217
          %282 = vst [vmem:[#allocation3 + $0x30] sm:$0xff] %v218
          %283 = vst [vmem:[#allocation3 + $0x38] sm:$0xff] %v219
          %284 = vst [vmem:[#allocation3 + $0x40] sm:$0xff] %v220
          %285 = vst [vmem:[#allocation3 + $0x48] sm:$0xff] %v221
          %286 = vst [vmem:[#allocation3 + $0x50] sm:$0xff] %v222
          %287 = vst [vmem:[#allocation3 + $0x58] sm:$0xff] %v223
          %288 = vst [vmem:[#allocation3 + $0x60] sm:$0xff] %v224
          %289 = vst [vmem:[#allocation3 + $0x68] sm:$0xff] %v225
          %290 = vst [vmem:[#allocation3 + $0x70] sm:$0xff] %v226
          %291 = vst [vmem:[#allocation3 + $0x78] sm:$0xff] %v227
          %292 = vst [vmem:[#allocation3 + $0x80] sm:$0xff] %v228
          %293 = vst [vmem:[#allocation3 + $0x88] sm:$0xff] %v229
          %294 = vst [vmem:[#allocation3 + $0x90] sm:$0xff] %v230
          %295 = vst [vmem:[#allocation3 + $0x98] sm:$0xff] %v231
          %296 = vst [vmem:[#allocation3 + $0xa0] sm:$0xff] %v232
          %297 = vst [vmem:[#allocation3 + $0xa8] sm:$0xff] %v233
          %298 = vst [vmem:[#allocation3 + $0xb0] sm:$0xff] %v234
          %299 = vst [vmem:[#allocation3 + $0xb8] sm:$0xff] %v235
          %300 = vst [vmem:[#allocation3 + $0xc0] sm:$0xff] %v236
          %301 = vst [vmem:[#allocation3 + $0xc8] sm:$0xff] %v237
          %302 = vst [vmem:[#allocation3 + $0xd0] sm:$0xff] %v238
          %303 = vst [vmem:[#allocation3 + $0xd8] sm:$0xff] %v239
          %304 = vst [vmem:[#allocation3 + $0xe0] sm:$0xff] %v240
          %305 = vst [vmem:[#allocation3 + $0xe8] sm:$0xff] %v241
          %306 = vst [vmem:[#allocation3 + $0xf0] sm:$0xff] %v242
          %307 = vst [vmem:[#allocation3 + $0xf8] sm:$0xff] %v243
        $region40: #{tpu_custom_call.1} parent=27 // pred_fallthru
          _
        // Predicated region
        $region41: #{tpu_custom_call.1} parent=27 // pred_check
          %p308 = pneg %p207
        $region42: #{tpu_custom_call.1} parent=27 // pred_check_branch
          %310 = sbr.rel (%p308) target = $region44
        $region43: #{tpu_custom_call.1} parent=27 // pred_region
          %311 = vst [vmem:[#allocation4] sm:$0xff] 0.0
          %312 = vst [vmem:[#allocation4 + $0x8] sm:$0xff] 0.0
          %313 = vst [vmem:[#allocation4 + $0x10] sm:$0xff] 0.0
          %314 = vst [vmem:[#allocation4 + $0x18] sm:$0xff] 0.0
          %315 = vst [vmem:[#allocation4 + $0x20] sm:$0xff] 0.0
          %316 = vst [vmem:[#allocation4 + $0x28] sm:$0xff] 0.0
          %317 = vst [vmem:[#allocation4 + $0x30] sm:$0xff] 0.0
          %318 = vst [vmem:[#allocation4 + $0x38] sm:$0xff] 0.0
          %319 = vst [vmem:[#allocation4 + $0x40] sm:$0xff] 0.0
          %320 = vst [vmem:[#allocation4 + $0x48] sm:$0xff] 0.0
          %321 = vst [vmem:[#allocation4 + $0x50] sm:$0xff] 0.0
          %322 = vst [vmem:[#allocation4 + $0x58] sm:$0xff] 0.0
          %323 = vst [vmem:[#allocation4 + $0x60] sm:$0xff] 0.0
          %324 = vst [vmem:[#allocation4 + $0x68] sm:$0xff] 0.0
          %325 = vst [vmem:[#allocation4 + $0x70] sm:$0xff] 0.0
          %326 = vst [vmem:[#allocation4 + $0x78] sm:$0xff] 0.0
        $region44: #{tpu_custom_call.1} parent=27 // pred_fallthru
          _
        %p327 = scmp.lt.s32.totalorder %s25, 0
        %s328 = ssub.s32 0, %s25
        %s329 = scalar_select %p327, %s328, %s25
        %s330 = sand.u32 %s329, 1
        %s331 = ssub.s32 0, %s330
        %s332 = scalar_select %p327, %s331, %s330
        %p333 = scmp.ne.s32.totalorder %s332, 0
        %p334 = scmp.lt.s32.totalorder %s332, 0
        %p335 = pnand %p334, %p333
        %p336 = pneg %p335
        %s337 = sadd.s32 %s332, 2
        %s338 = scalar_select %p336, %s337, %s332
        %s339 = smul.u32 %s338, 256
        %s340 = smul.u32 %s27, 128
        %s341 = sadd.s32 %s339, %s340
        %s342 = sshra.s32 %s341, 4
        %s343 = sand.u32 %s341, 15
        %s344 = smul.addr %s342, 8
        %s345 = scalar_lea.vmem [#allocation2], %s344
        %v346 = vld [vmem:[%s345] sm:$0xff]
        %v347 = vld [vmem:[%s345 + $0x8] sm:$0xff]
        %v348 = vld [vmem:[%s345 + $0x10] sm:$0xff]
        %v349 = vld [vmem:[%s345 + $0x18] sm:$0xff]
        %v350 = vld [vmem:[%s345 + $0x20] sm:$0xff]
        %v351 = vld [vmem:[%s345 + $0x28] sm:$0xff]
        %v352 = vld [vmem:[%s345 + $0x30] sm:$0xff]
        %v353 = vld [vmem:[%s345 + $0x38] sm:$0xff]
        %v354 = vld [vmem:[#allocation4] sm:$0xff]
        %v355 = vld [vmem:[#allocation4 + $0x8] sm:$0xff]
        %v356 = vld [vmem:[#allocation4 + $0x10] sm:$0xff]
        %v357 = vld [vmem:[#allocation4 + $0x18] sm:$0xff]
        %v358 = vld [vmem:[#allocation4 + $0x20] sm:$0xff]
        %v359 = vld [vmem:[#allocation4 + $0x28] sm:$0xff]
        %v360 = vld [vmem:[#allocation4 + $0x30] sm:$0xff]
        %v361 = vld [vmem:[#allocation4 + $0x38] sm:$0xff]
        %v362 = vld [vmem:[#allocation4 + $0x40] sm:$0xff]
        %v363 = vld [vmem:[#allocation4 + $0x48] sm:$0xff]
        %v364 = vld [vmem:[#allocation4 + $0x50] sm:$0xff]
        %v365 = vld [vmem:[#allocation4 + $0x58] sm:$0xff]
        %v366 = vld [vmem:[#allocation4 + $0x60] sm:$0xff]
        %v367 = vld [vmem:[#allocation4 + $0x68] sm:$0xff]
        %v368 = vld [vmem:[#allocation4 + $0x70] sm:$0xff]
        %v369 = vld [vmem:[#allocation4 + $0x78] sm:$0xff]
        %v370 = vld [vmem:[%s175] sm:$0xf]
        %v371 = vld [vmem:[%s175 + $0x4] sm:$0xf]
        %v372 = vld [vmem:[%s175 + $0x8] sm:$0xf]
        %v373 = vld [vmem:[%s175 + $0xc] sm:$0xf]
        %v374 = vld [vmem:[%s175 + $0x10] sm:$0xf]
        %v375 = vld [vmem:[%s175 + $0x14] sm:$0xf]
        %v376 = vld [vmem:[%s175 + $0x18] sm:$0xf]
        %v377 = vld [vmem:[%s175 + $0x1c] sm:$0xf]
        %v378 = vld [vmem:[%s175 + $0x20] sm:$0xf]
        %v379 = vld [vmem:[%s175 + $0x24] sm:$0xf]
        %v380 = vld [vmem:[%s175 + $0x28] sm:$0xf]
        %v381 = vld [vmem:[%s175 + $0x2c] sm:$0xf]
        %v382 = vld [vmem:[%s175 + $0x30] sm:$0xf]
        %v383 = vld [vmem:[%s175 + $0x34] sm:$0xf]
        %v384 = vld [vmem:[%s175 + $0x38] sm:$0xf]
        %v385 = vld [vmem:[%s175 + $0x3c] sm:$0xf]
        %v402 = vunpack.c.l.b16 %v370
        %v403 = vunpack.c.l.b16 %v371
        %v404 = vunpack.c.l.b16 %v372
        %v405 = vunpack.c.l.b16 %v373
        %v406 = vunpack.c.l.b16 %v374
        %v407 = vunpack.c.l.b16 %v375
        %v408 = vunpack.c.l.b16 %v376
        %v409 = vunpack.c.l.b16 %v377
        %v410 = vunpack.c.l.b16 %v378
        %v411 = vunpack.c.l.b16 %v379
        %v412 = vunpack.c.l.b16 %v380
        %v413 = vunpack.c.l.b16 %v381
        %v414 = vunpack.c.l.b16 %v382
        %v415 = vunpack.c.l.b16 %v383
        %v416 = vunpack.c.l.b16 %v384
        %v417 = vunpack.c.l.b16 %v385
        %v418 = vpack.c.b16 %v403, %v402
        %v419 = vpack.c.b16 %v405, %v404
        %v420 = vpack.c.b16 %v407, %v406
        %v421 = vpack.c.b16 %v409, %v408
        %v422 = vpack.c.b16 %v411, %v410
        %v423 = vpack.c.b16 %v413, %v412
        %v424 = vpack.c.b16 %v415, %v414
        %v425 = vpack.c.b16 %v417, %v416
        %434 = vmatprep.subr.bf16.mxu0 0
        %435 = vmatpush1.bf16.msra.mxu0 %v346
        %436 = vmatprep.subr.bf16.mxu0 0
        %437 = vmatpush1.bf16.msra.mxu0 %v347
        %438 = vmatprep.subr.bf16.mxu0 0
        %439 = vmatpush1.bf16.msra.mxu0 %v348
        %440 = vmatprep.subr.bf16.mxu0 0
        %441 = vmatpush1.bf16.msra.mxu0 %v349
        %442 = vmatprep.subr.bf16.mxu0 0
        %443 = vmatpush1.bf16.msra.mxu0 %v350
        %444 = vmatprep.subr.bf16.mxu0 0
        %445 = vmatpush1.bf16.msra.mxu0 %v351
        %446 = vmatprep.subr.bf16.mxu0 0
        %447 = vmatpush1.bf16.msra.mxu0 %v352
        %448 = vmatprep.subr.bf16.mxu0 0
        %449 = vmatpush1.bf16.msra.mxu0 %v353
        %450 = vmatprep.subr.bf16.mxu0 0
        %451 = vmatpush1.bf16.msra.mxu0 0
        %452 = vmatprep.subr.bf16.mxu0 0
        %453 = vmatpush1.bf16.msra.mxu0 0
        %454 = vmatprep.subr.bf16.mxu0 0
        %455 = vmatpush1.bf16.msra.mxu0 0
        %456 = vmatprep.subr.bf16.mxu0 0
        %457 = vmatpush1.bf16.msra.mxu0 0
        %458 = vmatprep.subr.bf16.mxu0 0
        %459 = vmatpush1.bf16.msra.mxu0 0
        %460 = vmatprep.subr.bf16.mxu0 0
        %461 = vmatpush1.bf16.msra.mxu0 0
        %462 = vmatprep.subr.bf16.mxu0 0
        %463 = vmatpush1.bf16.msra.mxu0 0
        %464 = vmatprep.subr.bf16.mxu0 0
        %465 = vmatpush1.bf16.msra.mxu0 0
        %466 = vmatprep.mubr.bf16.mxu0 0
        %467 = vmatmul.mubr.bf16.gmra.mrb[0].mxu0 %v418
        %v468 = vpop.f32.mrb[0].mxu0
        %v469 = vadd.f32 0.0, %v468
        %v470 = vpop.f32.mrb[0].mxu0
        %v471 = vpop.f32.mrb[0].mxu0
        %v472 = vadd.f32 0.0, %v471
        %v473 = vpop.f32.mrb[0].mxu0
        %474 = vmatprep.mubr.bf16.mxu0 0
        %475 = vmatmul.mubr.bf16.gmra.mrb[0].mxu0 %v419
        %v476 = vpop.f32.mrb[0].mxu0
        %v477 = vadd.f32 0.0, %v476
        %v478 = vpop.f32.mrb[0].mxu0
        %v479 = vpop.f32.mrb[0].mxu0
        %v480 = vadd.f32 0.0, %v479
        %v481 = vpop.f32.mrb[0].mxu0
        %482 = vmatprep.mubr.bf16.mxu0 0
        %483 = vmatmul.mubr.bf16.gmra.mrb[0].mxu0 %v420
        %v484 = vpop.f32.mrb[0].mxu0
        %v485 = vadd.f32 0.0, %v484
        %v486 = vpop.f32.mrb[0].mxu0
        %v487 = vpop.f32.mrb[0].mxu0
        %v488 = vadd.f32 0.0, %v487
        %v489 = vpop.f32.mrb[0].mxu0
        %490 = vmatprep.mubr.bf16.mxu0 0
        %491 = vmatmul.mubr.bf16.gmra.mrb[0].mxu0 %v421
        %v492 = vpop.f32.mrb[0].mxu0
        %v493 = vadd.f32 0.0, %v492
        %v494 = vpop.f32.mrb[0].mxu0
        %v495 = vpop.f32.mrb[0].mxu0
        %v496 = vadd.f32 0.0, %v495
        %v497 = vpop.f32.mrb[0].mxu0
        %498 = vmatprep.mubr.bf16.mxu0 0
        %499 = vmatmul.mubr.bf16.gmra.mrb[0].mxu0 %v422
        %v500 = vpop.f32.mrb[0].mxu0
        %v501 = vadd.f32 0.0, %v500
        %v502 = vpop.f32.mrb[0].mxu0
        %v503 = vpop.f32.mrb[0].mxu0
        %v504 = vadd.f32 0.0, %v503
        %v505 = vpop.f32.mrb[0].mxu0
        %506 = vmatprep.mubr.bf16.mxu0 0
        %507 = vmatmul.mubr.bf16.gmra.mrb[0].mxu0 %v423
        %v508 = vpop.f32.mrb[0].mxu0
        %v509 = vadd.f32 0.0, %v508
        %v510 = vpop.f32.mrb[0].mxu0
        %v511 = vpop.f32.mrb[0].mxu0
        %v512 = vadd.f32 0.0, %v511
        %v513 = vpop.f32.mrb[0].mxu0
        %514 = vmatprep.mubr.bf16.mxu0 0
        %515 = vmatmul.mubr.bf16.gmra.mrb[0].mxu0 %v424
        %v516 = vpop.f32.mrb[0].mxu0
        %v517 = vadd.f32 0.0, %v516
        %v518 = vpop.f32.mrb[0].mxu0
        %v519 = vpop.f32.mrb[0].mxu0
        %v520 = vadd.f32 0.0, %v519
        %v521 = vpop.f32.mrb[0].mxu0
        %522 = vmatprep.mubr.bf16.mxu0 0
        %523 = vmatmul.mubr.bf16.gmra.mrb[0].mxu0 %v425
        %v524 = vpop.f32.mrb[0].mxu0
        %v525 = vadd.f32 0.0, %v524
        %v526 = vpop.f32.mrb[0].mxu0
        %v527 = vpop.f32.mrb[0].mxu0
        %v528 = vadd.f32 0.0, %v527
        %v529 = vpop.f32.mrb[0].mxu0
        %530 = vdwg.mxu0
        %v531 = vadd.f32 %v354, %v469
        %v532 = vadd.f32 %v355, %v472
        %v533 = vadd.f32 %v356, %v477
        %v534 = vadd.f32 %v357, %v480
        %v535 = vadd.f32 %v358, %v485
        %v536 = vadd.f32 %v359, %v488
        %v537 = vadd.f32 %v360, %v493
        %v538 = vadd.f32 %v361, %v496
        %v539 = vadd.f32 %v362, %v501
        %v540 = vadd.f32 %v363, %v504
        %v541 = vadd.f32 %v364, %v509
        %v542 = vadd.f32 %v365, %v512
        %v543 = vadd.f32 %v366, %v517
        %v544 = vadd.f32 %v367, %v520
        %v545 = vadd.f32 %v368, %v525
        %v546 = vadd.f32 %v369, %v528
        %547 = vst [vmem:[#allocation4] sm:$0xff] %v531
        %548 = vst [vmem:[#allocation4 + $0x8] sm:$0xff] %v532
        %549 = vst [vmem:[#allocation4 + $0x10] sm:$0xff] %v533
        %550 = vst [vmem:[#allocation4 + $0x18] sm:$0xff] %v534
        %551 = vst [vmem:[#allocation4 + $0x20] sm:$0xff] %v535
        %552 = vst [vmem:[#allocation4 + $0x28] sm:$0xff] %v536
        %553 = vst [vmem:[#allocation4 + $0x30] sm:$0xff] %v537
        %554 = vst [vmem:[#allocation4 + $0x38] sm:$0xff] %v538
        %555 = vst [vmem:[#allocation4 + $0x40] sm:$0xff] %v539
        %556 = vst [vmem:[#allocation4 + $0x48] sm:$0xff] %v540
        %557 = vst [vmem:[#allocation4 + $0x50] sm:$0xff] %v541
        %558 = vst [vmem:[#allocation4 + $0x58] sm:$0xff] %v542
        %559 = vst [vmem:[#allocation4 + $0x60] sm:$0xff] %v543
        %560 = vst [vmem:[#allocation4 + $0x68] sm:$0xff] %v544
        %561 = vst [vmem:[#allocation4 + $0x70] sm:$0xff] %v545
        %562 = vst [vmem:[#allocation4 + $0x78] sm:$0xff] %v546
        %p563 = scmp.eq.s32.totalorder %s27, 1
        // Predicated region
        $region45: #{tpu_custom_call.1} parent=27 // pred_check
          %p564 = pneg %p563
        $region46: #{tpu_custom_call.1} parent=27 // pred_check_branch
          %566 = sbr.rel (%p564) target = $region48
        $region47: #{tpu_custom_call.1} parent=27 // pred_region
          %v567 = vld [vmem:[#allocation4] sm:$0xff]
          %v568 = vld [vmem:[#allocation4 + $0x8] sm:$0xff]
          %v569 = vld [vmem:[#allocation4 + $0x10] sm:$0xff]
          %v570 = vld [vmem:[#allocation4 + $0x18] sm:$0xff]
          %v571 = vld [vmem:[#allocation4 + $0x20] sm:$0xff]
          %v572 = vld [vmem:[#allocation4 + $0x28] sm:$0xff]
          %v573 = vld [vmem:[#allocation4 + $0x30] sm:$0xff]
          %v574 = vld [vmem:[#allocation4 + $0x38] sm:$0xff]
          %v575 = vld [vmem:[#allocation4 + $0x40] sm:$0xff]
          %v576 = vld [vmem:[#allocation4 + $0x48] sm:$0xff]
          %v577 = vld [vmem:[#allocation4 + $0x50] sm:$0xff]
          %v578 = vld [vmem:[#allocation4 + $0x58] sm:$0xff]
          %v579 = vld [vmem:[#allocation4 + $0x60] sm:$0xff]
          %v580 = vld [vmem:[#allocation4 + $0x68] sm:$0xff]
          %v581 = vld [vmem:[#allocation4 + $0x70] sm:$0xff]
          %v582 = vld [vmem:[#allocation4 + $0x78] sm:$0xff]
          %s583 = smul.u32 %s26, 128
          %s584 = sadd.s32 %s25, 1
          %p585 = scmp.lt.s32.totalorder %s584, 0
          %s586 = ssub.s32 0, %s584
          %s587 = scalar_select %p585, %s586, %s584
          %s588 = sand.u32 %s587, 1
          %s589 = ssub.s32 0, %s588
          %s590 = scalar_select %p585, %s589, %s588
          %p591 = scmp.ne.s32.totalorder %s590, 0
          %p592 = scmp.lt.s32.totalorder %s590, 0
          %p593 = pnand %p592, %p591
          %p594 = pneg %p593
          %s595 = sadd.s32 %s590, 2
          %s596 = scalar_select %p594, %s595, %s590
          %s597 = smul.u32 %s596, 256
          %s598 = sadd.s32 %s597, %s583
          %v599 = vpack.c.bf16 %v568, %v567
          %v600 = vpack.c.bf16 %v570, %v569
          %v601 = vpack.c.bf16 %v572, %v571
          %v602 = vpack.c.bf16 %v574, %v573
          %v603 = vpack.c.bf16 %v576, %v575
          %v604 = vpack.c.bf16 %v578, %v577
          %v605 = vpack.c.bf16 %v580, %v579
          %v606 = vpack.c.bf16 %v582, %v581
          %s607 = sshra.s32 %s598, 4
          %s608 = sand.u32 %s598, 15
          %s609 = smul.addr %s607, 8
          %s610 = scalar_lea.vmem [#allocation2], %s609
          %611 = vst [vmem:[%s610] sm:$0xff] %v599
          %612 = vst [vmem:[%s610 + $0x8] sm:$0xff] %v600
          %613 = vst [vmem:[%s610 + $0x10] sm:$0xff] %v601
          %614 = vst [vmem:[%s610 + $0x18] sm:$0xff] %v602
          %615 = vst [vmem:[%s610 + $0x20] sm:$0xff] %v603
          %616 = vst [vmem:[%s610 + $0x28] sm:$0xff] %v604
          %617 = vst [vmem:[%s610 + $0x30] sm:$0xff] %v605
          %618 = vst [vmem:[%s610 + $0x38] sm:$0xff] %v606
          %s619 = scalar_lea.vmem [#allocation3], %s583
          %v620 = vld [vmem:[%s619] sm:$0xff]
          %v621 = vld [vmem:[%s619 + $0x8] sm:$0xff]
          %v622 = vld [vmem:[%s619 + $0x10] sm:$0xff]
          %v623 = vld [vmem:[%s619 + $0x18] sm:$0xff]
          %v624 = vld [vmem:[%s619 + $0x20] sm:$0xff]
          %v625 = vld [vmem:[%s619 + $0x28] sm:$0xff]
          %v626 = vld [vmem:[%s619 + $0x30] sm:$0xff]
          %v627 = vld [vmem:[%s619 + $0x38] sm:$0xff]
          %v628 = vld [vmem:[%s619 + $0x40] sm:$0xff]
          %v629 = vld [vmem:[%s619 + $0x48] sm:$0xff]
          %v630 = vld [vmem:[%s619 + $0x50] sm:$0xff]
          %v631 = vld [vmem:[%s619 + $0x58] sm:$0xff]
          %v632 = vld [vmem:[%s619 + $0x60] sm:$0xff]
          %v633 = vld [vmem:[%s619 + $0x68] sm:$0xff]
          %v634 = vld [vmem:[%s619 + $0x70] sm:$0xff]
          %v635 = vld [vmem:[%s619 + $0x78] sm:$0xff]
          %v636 = vadd.f32 %v620, %v567
          %v637 = vadd.f32 %v621, %v568
          %v638 = vadd.f32 %v622, %v569
          %v639 = vadd.f32 %v623, %v570
          %v640 = vadd.f32 %v624, %v571
          %v641 = vadd.f32 %v625, %v572
          %v642 = vadd.f32 %v626, %v573
          %v643 = vadd.f32 %v627, %v574
          %v644 = vadd.f32 %v628, %v575
          %v645 = vadd.f32 %v629, %v576
          %v646 = vadd.f32 %v630, %v577
          %v647 = vadd.f32 %v631, %v578
          %v648 = vadd.f32 %v632, %v579
          %v649 = vadd.f32 %v633, %v580
          %v650 = vadd.f32 %v634, %v581
          %v651 = vadd.f32 %v635, %v582
          %652 = vst [vmem:[%s619] sm:$0xff] %v636
          %653 = vst [vmem:[%s619 + $0x8] sm:$0xff] %v637
          %654 = vst [vmem:[%s619 + $0x10] sm:$0xff] %v638
          %655 = vst [vmem:[%s619 + $0x18] sm:$0xff] %v639
          %656 = vst [vmem:[%s619 + $0x20] sm:$0xff] %v640
          %657 = vst [vmem:[%s619 + $0x28] sm:$0xff] %v641
          %658 = vst [vmem:[%s619 + $0x30] sm:$0xff] %v642
          %659 = vst [vmem:[%s619 + $0x38] sm:$0xff] %v643
          %660 = vst [vmem:[%s619 + $0x40] sm:$0xff] %v644
          %661 = vst [vmem:[%s619 + $0x48] sm:$0xff] %v645
          %662 = vst [vmem:[%s619 + $0x50] sm:$0xff] %v646
          %663 = vst [vmem:[%s619 + $0x58] sm:$0xff] %v647
          %664 = vst [vmem:[%s619 + $0x60] sm:$0xff] %v648
          %665 = vst [vmem:[%s619 + $0x68] sm:$0xff] %v649
          %666 = vst [vmem:[%s619 + $0x70] sm:$0xff] %v650
          %667 = vst [vmem:[%s619 + $0x78] sm:$0xff] %v651
          %v668 = vmul.f32 %v636, 0.25
          %v669 = vmul.f32 %v637, 0.25
          %v670 = vmul.f32 %v638, 0.25
          %v671 = vmul.f32 %v639, 0.25
          %v672 = vmul.f32 %v640, 0.25
          %v673 = vmul.f32 %v641, 0.25
          %v674 = vmul.f32 %v642, 0.25
          %v675 = vmul.f32 %v643, 0.25
          %v676 = vmul.f32 %v644, 0.25
          %v677 = vmul.f32 %v645, 0.25
          %v678 = vmul.f32 %v646, 0.25
          %v679 = vmul.f32 %v647, 0.25
          %v680 = vmul.f32 %v648, 0.25
          %v681 = vmul.f32 %v649, 0.25
          %v682 = vmul.f32 %v650, 0.25
          %v683 = vmul.f32 %v651, 0.25
          %684 = vst [vmem:[%s199] sm:$0xff] %v668
          %685 = vst [vmem:[%s199 + $0x8] sm:$0xff] %v669
          %686 = vst [vmem:[%s199 + $0x10] sm:$0xff] %v670
          %687 = vst [vmem:[%s199 + $0x18] sm:$0xff] %v671
          %688 = vst [vmem:[%s199 + $0x20] sm:$0xff] %v672
          %689 = vst [vmem:[%s199 + $0x28] sm:$0xff] %v673
          %690 = vst [vmem:[%s199 + $0x30] sm:$0xff] %v674
          %691 = vst [vmem:[%s199 + $0x38] sm:$0xff] %v675
          %692 = vst [vmem:[%s199 + $0x40] sm:$0xff] %v676
          %693 = vst [vmem:[%s199 + $0x48] sm:$0xff] %v677
          %694 = vst [vmem:[%s199 + $0x50] sm:$0xff] %v678
          %695 = vst [vmem:[%s199 + $0x58] sm:$0xff] %v679
          %696 = vst [vmem:[%s199 + $0x60] sm:$0xff] %v680
          %697 = vst [vmem:[%s199 + $0x68] sm:$0xff] %v681
          %698 = vst [vmem:[%s199 + $0x70] sm:$0xff] %v682
          %699 = vst [vmem:[%s199 + $0x78] sm:$0xff] %v683
        $region48: #{tpu_custom_call.1} parent=27 // pred_fallthru
          _
        %s700 = sand.u32 %s96, 1
        %s701 = scalar_lea.sflag [#allocation7], %s700
        %s702 = sand.u32 %s96, 1
        %s703 = smul.addr %s702, 128
        %s704 = scalar_lea.vmem [#allocation10], %s703
        // Predicated region
        $region49: #{tpu_custom_call.1} parent=27 // pred_check
          %p705 = pneg %p106
        $region50: #{tpu_custom_call.1} parent=27 // pred_check_branch
          %707 = sbr.rel (%p705) target = $region52
        $region51: #{tpu_custom_call.1} parent=27 // pred_region
          %s708 = smul.u32 16, %s26
          %s710 = ssub.s32 2048, 2048
          %711 = vsyncadd %s701, %s710
          %s712 = smul.addr %s708, 128
          %s713 = scalar_lea.hbm %s2, %s712
          %s714 = sshll.u32 %s704, 4
          %s715 = int_to_ptr.vmem [resolvable:$true] %s714
          %720 = dma.vmem_to_hbm [thread:$0]  %s715, 2048, %s713, %s701, 128, 128, 8
        $region52: #{tpu_custom_call.1} parent=27 // pred_fallthru
          _
      $region28: #{tpu_custom_call.1} parent=5 // pred_fallthru
        _
      %p721 = scmp.le.s32.totalorder 2, %s15
      // Predicated region
      $region53: #{tpu_custom_call.1} parent=5 // pred_check
        %p722 = pneg %p721
      $region54: #{tpu_custom_call.1} parent=5 // pred_check_branch
        %724 = sbr.rel (%p722) target = $region56
      $region55: #{tpu_custom_call.1} parent=5 // pred_region
        %s725 = ssub.s32 %s15, 2
        // Predicated region
        $region57: #{tpu_custom_call.1} parent=55 // pred_check
          %p726 = pneg %p112
        $region58: #{tpu_custom_call.1} parent=55 // pred_check_branch
          %728 = sbr.rel (%p726) target = $region60
        $region59: #{tpu_custom_call.1} parent=55 // pred_region
          %s729 = sand.u32 %s97, 1
          %s730 = scalar_lea.sflag [#allocation7], %s729
          %s731 = sand.u32 %s97, 1
          %s732 = smul.addr %s731, 128
          %s733 = scalar_lea.vmem [#allocation10], %s732
          %734 = dma.done %s730, 2048
        $region60: #{tpu_custom_call.1} parent=55 // pred_fallthru
          _
      $region56: #{tpu_custom_call.1} parent=5 // pred_fallthru
        _
    $region6: #{tpu_custom_call.1} parent=1 // loop_footer
      %s19 = sadd.s32 1, %s15
    $region7: #{tpu_custom_call.1} parent=1 // loop_footer_branch
      %14 = sbr.rel target = $region3
    $region8: #{tpu_custom_call.1} parent=1 // loop_exit
      _
    %735 = vsyncpa [#allocation6], 1
    %s736 = scalar_lea.sflag [#allocation6], 1
    %737 = vsyncpa %s736, 1
    %738 = vsyncpa [#allocation9], 1
    %739 = vsyncpa [#allocation7], 1
    %s740 = scalar_lea.sflag [#allocation7], 1
    %741 = vsyncpa %s740, 1

</llo_original>
